<compile_context>
chip_gen: v6e
topology: v6e:2x2x1
jax: 0.10.0
libtpu: 0.0.40
codegen_flags: <defaults>
</compile_context>

<pallas_src>
import math

import jax
import jax.numpy as jnp
from jax.experimental import pallas as pl
from jax.experimental.pallas import tpu as pltpu

_LANE = 128
_TARGET_BLOCK_BYTES = 2 * 1024 * 1024  # per input, per pipeline buffer (f32)


def _cdiv(a, b):
    return -(-a // b)


def _kl_kernel(logits_ref, target_ref, out_ref, acc_ref):
    """One (C, T) pixel tile of one batch element.

    logits_ref, target_ref: (C, T)   C = full channel dim, T = pixel tile
    out_ref:                (8, 128) per-batch-element partial sum (scalar splat)
    acc_ref:                (1, T)   f32 per-pixel running KL sums (VMEM scratch)
    """
    i = pl.program_id(1)

    @pl.when(i == 0)
    def _():
        acc_ref[...] = jnp.zeros_like(acc_ref)

    logits = logits_ref[...].astype(jnp.float32)   # (C, T)
    target = target_ref[...].astype(jnp.float32)   # (C, T)

    # Numerically-stable log-softmax pieces over the channel axis (axis 0),
    # folded so log_prob is never materialized:
    #   kl_p = sum_c t*(log(t+eps) - (logits - m)) + lse * sum_c t
    m = jnp.max(logits, axis=0, keepdims=True)                        # (1, T)
    shifted = logits - m                                              # (C, T)
    lse = jnp.log(jnp.sum(jnp.exp(shifted), axis=0, keepdims=True))   # (1, T)

    a = jnp.sum(target * (jnp.log(target + 1e-10) - shifted),
                axis=0, keepdims=True)                                # (1, T)
    t_sum = jnp.sum(target, axis=0, keepdims=True)                    # (1, T)

    # Elementwise accumulate (VPU only); padded pixels (target == 0) add 0.
    acc_ref[...] += a + lse * t_sum

    # Single scalar reduce per batch element, on the last pixel tile only.
    @pl.when(i == pl.num_programs(1) - 1)
    def _():
        out_ref[...] = jnp.zeros_like(out_ref) + jnp.sum(acc_ref[...])


@jax.jit
def kl_divergence_per_pixel_loss(logits, target):
    """Pallas implementation of KLDivergencePerPixelLoss.forward.

    Args:
      logits: (N, C, *pixel_dims) array.
      target: (N, C, *pixel_dims) array of per-pixel probability distributions.
    Returns:
      scalar float32 mean KL divergence over all pixels.
    """
    assert logits.shape == target.shape, "Logits and target must have the same shape."
    N, C = logits.shape[0], logits.shape[1]
    P = math.prod(logits.shape[2:])  # static Python int (fixes tracer issue)

    # (N, C, *) -> (N, C, P): free reshape, no HBM transpose.
    logits3 = logits.reshape(N, C, P)
    target3 = target.reshape(N, C, P)

    # Pixel tile: ~_TARGET_BLOCK_BYTES per f32 input block, lane aligned, and
    # chosen so that zero-padding of the pixel axis stays below 128 * n_tiles.
    target_px = max(_LANE, (_TARGET_BLOCK_BYTES // (C * 4)) // _LANE * _LANE)
    n_tiles = max(1, _cdiv(P, target_px))
    px_per_block = _cdiv(_cdiv(P, n_tiles), _LANE) * _LANE
    P_pad = n_tiles * px_per_block

    if P_pad != P:
        pad = ((0, 0), (0, 0), (0, P_pad - P))
        # Padded pixels have target == 0 -> contribute exactly 0 to the KL sum.
        logits3 = jnp.pad(logits3, pad)
        target3 = jnp.pad(target3, pad)

    in_spec = pl.BlockSpec((None, C, px_per_block), lambda n, i: (n, 0, i))

    partials = pl.pallas_call(
        _kl_kernel,
        out_shape=jax.ShapeDtypeStruct((N, 8, _LANE), jnp.float32),
        grid_spec=pltpu.PrefetchScalarGridSpec(
            num_scalar_prefetch=0,
            grid=(N, n_tiles),
            in_specs=[in_spec, in_spec],
            out_specs=pl.BlockSpec((None, 8, _LANE), lambda n, i: (n, 0, 0)),
            scratch_shapes=[pltpu.VMEM((1, px_per_block), jnp.float32)],
        ),
        compiler_params=pltpu.CompilerParams(
            # Batch axis parallel (v7x megacore); pixel-tile axis is the reduction.
            dimension_semantics=("parallel", "arbitrary"),
            # Raise scoped VMEM above v5e/v6e defaults; still within v7x's 64 MiB.
            vmem_limit_bytes=48 * 1024 * 1024,
        ),
    )(logits3, target3)

    total = jnp.sum(partials[:, 0, 0])
    return total / jnp.float32(N * P)


def _reference(logits, target):
    """Pure-JAX reference matching the PyTorch module."""
    log_prob = jax.nn.log_softmax(logits.astype(jnp.float32), axis=1)
    t = target.astype(jnp.float32)
    kl = t * (jnp.log(t + 1e-10) - log_prob)
    return jnp.mean(jnp.sum(kl, axis=1))


if __name__ == "__main__":
    key = jax.random.PRNGKey(0)
    k1, k2, k3, k4 = jax.random.split(key, 4)

    # Case 1: lane-friendly pixel count.
    N, C, H, W = 2, 4, 16, 16
    logits = jax.random.normal(k1, (N, C, H, W), dtype=jnp.float32)
    target = jax.nn.softmax(
        jax.random.normal(k2, (N, C, H, W), dtype=jnp.float32), axis=1)
    loss = jax.block_until_ready(kl_divergence_per_pixel_loss(logits, target))
    ref = _reference(logits, target)
    assert jnp.allclose(loss, ref, rtol=1e-5, atol=1e-5), (loss, ref)

    # Case 2: ragged pixel count (exercises the zero-padding path).
    N2, C2, H2, W2 = 2, 4, 5, 7
    logits2 = jax.random.normal(k3, (N2, C2, H2, W2), dtype=jnp.float32)
    target2 = jax.nn.softmax(
        jax.random.normal(k4, (N2, C2, H2, W2), dtype=jnp.float32), axis=1)
    loss2 = jax.block_until_ready(kl_divergence_per_pixel_loss(logits2, target2))
    ref2 = _reference(logits2, target2)
    assert jnp.allclose(loss2, ref2, rtol=1e-5, atol=1e-5), (loss2, ref2)

    print("KERNEL_OK")
</pallas_src>

<mosaic_0001>
module attributes {stable_mosaic.version = 11 : i64} {
  func.func @_kl_kernel(%arg0: i32, %arg1: i32, %arg2: memref<1x4x256xf32, #tpu.memory_space<vmem>>, %arg3: memref<1x4x256xf32, #tpu.memory_space<vmem>>, %arg4: memref<1x8x128xf32, #tpu.memory_space<vmem>>, %arg5: memref<1x256xf32, #tpu.memory_space<vmem>>) attributes {dimension_semantics = [#tpu.dimension_semantics<parallel>, #tpu.dimension_semantics<arbitrary>], iteration_bounds = array<i64: 2, 1>, scalar_prefetch = 0 : i64, scratch_operands = 1 : i64, tpu.core_type = #tpu.core_type<tc>, window_params = [{transform_indices = @transform_0, window_bounds = array<i64: 1, 4, 256>}, {transform_indices = @transform_1, window_bounds = array<i64: 1, 4, 256>}, {transform_indices = @transform_2, window_bounds = array<i64: 1, 8, 128>}]} {
    %c0_i32 = arith.constant 0 : i32
    %0 = arith.cmpi eq, %arg1, %c0_i32 : i32
    %1 = arith.extui %0 : i1 to i32
    %c0_i32_0 = arith.constant 0 : i32
    %2 = arith.cmpi ne, %1, %c0_i32_0 : i32
    scf.if %2 {
      %cst_16 = arith.constant 0.000000e+00 : f32
      %32 = vector.broadcast %cst_16 : f32 to vector<1x256xf32>
      %c0_17 = arith.constant 0 : index
      %c0_18 = arith.constant 0 : index
      %33 = vector.load %arg5[%c0_17, %c0_18] : memref<1x256xf32, #tpu.memory_space<vmem>>, vector<1x256xf32>
      tpu.vector_store %arg5[%c0_17, %c0_18], %32 {strides = array<i32>} : memref<1x256xf32, #tpu.memory_space<vmem>>, vector<1x256xf32>,
    } else {
    }
    %c0 = arith.constant 0 : index
    %c0_1 = arith.constant 0 : index
    %c0_2 = arith.constant 0 : index
    %3 = vector.load %arg2[%c0, %c0_1, %c0_2] : memref<1x4x256xf32, #tpu.memory_space<vmem>>, vector<1x4x256xf32>
    %4 = vector.shape_cast %3 : vector<1x4x256xf32> to vector<4x256xf32>
    %c0_3 = arith.constant 0 : index
    %c0_4 = arith.constant 0 : index
    %c0_5 = arith.constant 0 : index
    %5 = vector.load %arg3[%c0_3, %c0_4, %c0_5] : memref<1x4x256xf32, #tpu.memory_space<vmem>>, vector<1x4x256xf32>
    %6 = vector.shape_cast %5 : vector<1x4x256xf32> to vector<4x256xf32>
    %cst = arith.constant dense<0xFF800000> : vector<256xf32>
    %7 = vector.multi_reduction <maximumf>, %4, %cst [0] : vector<4x256xf32> to vector<256xf32>
    %8 = vector.shape_cast %7 : vector<256xf32> to vector<1x256xf32>
    %9 = vector.broadcast %8 : vector<1x256xf32> to vector<4x256xf32>
    %10 = arith.subf %4, %9 : vector<4x256xf32>
    %11 = math.exp %10 : vector<4x256xf32>
    %cst_6 = arith.constant dense<0.000000e+00> : vector<256xf32>
    %12 = vector.multi_reduction <add>, %11, %cst_6 [0] : vector<4x256xf32> to vector<256xf32>
    %13 = vector.shape_cast %12 : vector<256xf32> to vector<1x256xf32>
    %14 = math.log %13 : vector<1x256xf32>
    %cst_7 = arith.constant 1.000000e-10 : f32
    %15 = vector.broadcast %cst_7 : f32 to vector<4x256xf32>
    %16 = arith.addf %6, %15 : vector<4x256xf32>
    %17 = math.log %16 : vector<4x256xf32>
    %18 = arith.subf %17, %10 : vector<4x256xf32>
    %19 = arith.mulf %6, %18 : vector<4x256xf32>
    %cst_8 = arith.constant dense<0.000000e+00> : vector<256xf32>
    %20 = vector.multi_reduction <add>, %19, %cst_8 [0] : vector<4x256xf32> to vector<256xf32>
    %21 = vector.shape_cast %20 : vector<256xf32> to vector<1x256xf32>
    %cst_9 = arith.constant dense<0.000000e+00> : vector<256xf32>
    %22 = vector.multi_reduction <add>, %6, %cst_9 [0] : vector<4x256xf32> to vector<256xf32>
    %23 = vector.shape_cast %22 : vector<256xf32> to vector<1x256xf32>
    %c0_10 = arith.constant 0 : index
    %c0_11 = arith.constant 0 : index
    %24 = vector.load %arg5[%c0_10, %c0_11] : memref<1x256xf32, #tpu.memory_space<vmem>>, vector<1x256xf32>
    %25 = arith.mulf %14, %23 : vector<1x256xf32>
    %26 = arith.addf %21, %25 : vector<1x256xf32>
    %27 = arith.addf %24, %26 : vector<1x256xf32>
    %c0_12 = arith.constant 0 : index
    %c0_13 = arith.constant 0 : index
    %28 = vector.load %arg5[%c0_12, %c0_13] : memref<1x256xf32, #tpu.memory_space<vmem>>, vector<1x256xf32>
    tpu.vector_store %arg5[%c0_12, %c0_13], %27 {strides = array<i32>} : memref<1x256xf32, #tpu.memory_space<vmem>>, vector<1x256xf32>,
    %c0_i32_14 = arith.constant 0 : i32
    %29 = arith.cmpi eq, %arg1, %c0_i32_14 : i32
    %30 = arith.extui %29 : i1 to i32
    %c0_i32_15 = arith.constant 0 : i32
    %31 = arith.cmpi ne, %30, %c0_i32_15 : i32
    scf.if %31 {
      %cst_16 = arith.constant 0.000000e+00 : f32
      %32 = vector.broadcast %cst_16 : f32 to vector<8x128xf32>
      %c0_17 = arith.constant 0 : index
      %c0_18 = arith.constant 0 : index
      %33 = vector.load %arg5[%c0_17, %c0_18] : memref<1x256xf32, #tpu.memory_space<vmem>>, vector<1x256xf32>
      %34 = vector.shape_cast %33 : vector<1x256xf32> to vector<1x1x256xf32>
      %cst_19 = arith.constant dense<0.000000e+00> : vector<1xf32>
      %35 = vector.multi_reduction <add>, %34, %cst_19 [1, 2] : vector<1x1x256xf32> to vector<1xf32>
      %36 = vector.shape_cast %35 : vector<1xf32> to vector<1x1x1xf32>
      %37 = vector.extract %36[0, 0, 0] : f32 from vector<1x1x1xf32>
      %38 = vector.broadcast %37 : f32 to vector<8x128xf32>
      %39 = arith.addf %32, %38 : vector<8x128xf32>
      %c0_20 = arith.constant 0 : index
      %c0_21 = arith.constant 0 : index
      %c0_22 = arith.constant 0 : index
      %40 = vector.load %arg4[%c0_20, %c0_21, %c0_22] : memref<1x8x128xf32, #tpu.memory_space<vmem>>, vector<1x8x128xf32>
      %41 = vector.shape_cast %40 : vector<1x8x128xf32> to vector<8x128xf32>
      %42 = vector.shape_cast %39 : vector<8x128xf32> to vector<1x8x128xf32>
      tpu.vector_store %arg4[%c0_20, %c0_21, %c0_22], %42 {strides = array<i32>} : memref<1x8x128xf32, #tpu.memory_space<vmem>>, vector<1x8x128xf32>,
    } else {
    }
    return
  }
  func.func @transform_0(%arg0: i32, %arg1: i32) -> (i32, i32, i32) {
    %c0_i32 = arith.constant 0 : i32
    %c0_i32_0 = arith.constant 0 : i32
    return %arg0, %c0_i32, %arg1 : i32, i32, i32
  }
  func.func @transform_1(%arg0: i32, %arg1: i32) -> (i32, i32, i32) {
    %c0_i32 = arith.constant 0 : i32
    %c0_i32_0 = arith.constant 0 : i32
    return %arg0, %c0_i32, %arg1 : i32, i32, i32
  }
  func.func @transform_2(%arg0: i32, %arg1: i32) -> (i32, i32, i32) {
    %c0_i32 = arith.constant 0 : i32
    %c0_i32_0 = arith.constant 0 : i32
    %c0_i32_1 = arith.constant 0 : i32
    return %arg0, %c0_i32, %c0_i32_0 : i32, i32, i32
  }
}

</mosaic_0001>

<llo_original>
// kernel: kl_divergence_per_pixel_loss.1
$region0: #{kl_divergence_per_pixel_loss.1}
  #allocation0 [shape = 'u32[]', space=smem, size = 0x4, offset = 0x4, fixed_abs, tag = 'smem constant byte address 0x4 - core index']
  #allocation1 [shape = 'u32[144,128]{1,0:T(1,128)}', space=vmem, size = 0x12000, scoped, tag = 'internal scratch']
  #allocation2 [shape = 'f32[1,256]{1,0:T(1,128)}', space=vmem, size = 0x400, scoped, tag = 'scratch operand']
  %s0 = inlined_call_operand.vmem [shape: f32[2,4,256], index: 0, kind: input, shape index: {}]
  %s1 = inlined_call_operand.vmem [shape: f32[2,4,256], index: 1, kind: input, shape index: {}]
  %s2 = inlined_call_operand.vmem [shape: f32[2,8,128], index: 2, kind: output, shape index: {}]
  %s3 = sld [smem:[#allocation0]]
  $region49: #{kl_divergence_per_pixel_loss.1} parent=0
    _
  %s5 = ssub.s32 1, %s3
  %s6 = scalar_select 0, %s5, %s3
  loop: start=0, step=1, limit=4
  $region2: #{kl_divergence_per_pixel_loss.1} parent=0 // loop_pre_header
    _
  $region3: #{kl_divergence_per_pixel_loss.1} parent=0 // loop_header
    %s8 = sphi 0, %s12
    %p9 = scmp.ge.s32.totalorder %s8, 4
    %s15 = sphi 0, %s27
    %s16 = sphi 0, %s23
    %s17 = sphi 0, %s15
    %s18 = sphi 0, %s16
    %s19 = sphi 0, %s17
    %s20 = sphi 0, %s18
    %s32 = sphi 0, %s34
    %s35 = sphi 0, %s32
    %s36 = sphi 0, %s35
    %s52 = sphi 0, %s36
    %s60 = sphi 0, %s62
    %s63 = sphi 0, %s60
    %s64 = sphi 0, %s63
    %s80 = sphi 0, %s64
    %s86 = sphi 0, %s88
    %s89 = sphi 0, %s86
    %s90 = sphi 0, %s89
    %s106 = sphi 0, %s90
  $region4: #{kl_divergence_per_pixel_loss.1} parent=0 // loop_header_branch
    %11 = sbr.rel (%p9) target = $region8
  $region5: #{kl_divergence_per_pixel_loss.1} parent=0 // loop_body
    %s13 = ssub.s32 %s8, 1
    %s14 = ssub.s32 %s8, 2
    %s21 = sadd.s32 1, %s16
    %p22 = scmp.ge.s32.totalorder %s21, 1
    %s23 = scalar_select %p22, 0, %s21
    %s24 = sadd.s32 1, %s15
    %s25 = scalar_select %p22, %s24, %s15
    %p26 = scmp.ge.s32.totalorder %s25, 2
    %s27 = scalar_select %p26, 0, %s25
    %s28 = ssub.s32 %s15, %s27
    %s29 = ssub.s32 %s16, %s23
    %s30 = sor.u32 %s28, %s29
    %p31 = scmp.eq.s32.totalorder %s30, 0
    %s33 = sadd.s32 %s32, 1
    %s34 = scalar_select %p31, %s32, %s33
    %p37 = pneg %p31
    %p38 = scmp.eq.s32.totalorder %s8, 1
    %p39 = por %p37, %p38
    %p40 = scmp.ne.s32.totalorder %s32, %s35
    %p41 = scmp.eq.s32.totalorder %s8, 0
    %p42 = por %p40, %p41
    %p43 = scmp.ne.s32.totalorder %s32, %s35
    %p44 = scmp.eq.s32.totalorder %s13, 1
    %p45 = por %p43, %p44
    %p46 = scmp.ne.s32.totalorder %s35, %s36
    %p47 = scmp.eq.s32.totalorder %s13, 0
    %p48 = por %p46, %p47
    %p49 = scmp.ne.s32.totalorder %s35, %s36
    %p50 = scmp.eq.s32.totalorder %s14, 1
    %p51 = por %p49, %p50
    %p53 = scmp.ne.s32.totalorder %s36, %s52
    %p54 = scmp.eq.s32.totalorder %s14, 0
    %p55 = por %p53, %p54
    %s56 = ssub.s32 %s15, %s27
    %s57 = ssub.s32 %s16, %s23
    %s58 = sor.u32 %s56, %s57
    %p59 = scmp.eq.s32.totalorder %s58, 0
    %s61 = sadd.s32 %s60, 1
    %s62 = scalar_select %p59, %s60, %s61
    %p65 = pneg %p59
    %p66 = scmp.eq.s32.totalorder %s8, 1
    %p67 = por %p65, %p66
    %p68 = scmp.ne.s32.totalorder %s60, %s63
    %p69 = scmp.eq.s32.totalorder %s8, 0
    %p70 = por %p68, %p69
    %p71 = scmp.ne.s32.totalorder %s60, %s63
    %p72 = scmp.eq.s32.totalorder %s13, 1
    %p73 = por %p71, %p72
    %p74 = scmp.ne.s32.totalorder %s63, %s64
    %p75 = scmp.eq.s32.totalorder %s13, 0
    %p76 = por %p74, %p75
    %p77 = scmp.ne.s32.totalorder %s63, %s64
    %p78 = scmp.eq.s32.totalorder %s14, 1
    %p79 = por %p77, %p78
    %p81 = scmp.ne.s32.totalorder %s64, %s80
    %p82 = scmp.eq.s32.totalorder %s14, 0
    %p83 = por %p81, %p82
    %s84 = ssub.s32 %s15, %s27
    %p85 = scmp.eq.s32.totalorder %s84, 0
    %s87 = sadd.s32 %s86, 1
    %s88 = scalar_select %p85, %s86, %s87
    %p91 = pneg %p85
    %p92 = scmp.eq.s32.totalorder %s8, 1
    %p93 = por %p91, %p92
    %p94 = scmp.ne.s32.totalorder %s86, %s89
    %p95 = scmp.eq.s32.totalorder %s8, 0
    %p96 = por %p94, %p95
    %p97 = scmp.ne.s32.totalorder %s86, %s89
    %p98 = scmp.eq.s32.totalorder %s13, 1
    %p99 = por %p97, %p98
    %p100 = scmp.ne.s32.totalorder %s89, %s90
    %p101 = scmp.eq.s32.totalorder %s13, 0
    %p102 = por %p100, %p101
    %p103 = scmp.ne.s32.totalorder %s89, %s90
    %p104 = scmp.eq.s32.totalorder %s14, 1
    %p105 = por %p103, %p104
    %p107 = scmp.ne.s32.totalorder %s90, %s106
    %p108 = scmp.eq.s32.totalorder %s14, 0
    %p109 = por %p107, %p108
    %p110 = scmp.le.s32.totalorder 1, %s8
    %p111 = scmp.lt.s32.totalorder %s8, 3
    %p112 = pnand %p110, %p111
    %p113 = pneg %p112
    // Predicated region
    $region9: #{kl_divergence_per_pixel_loss.1} parent=5 // pred_check
      _
    $region10: #{kl_divergence_per_pixel_loss.1} parent=5 // pred_check_branch
      %115 = sbr.rel (%p112) target = $region12
    $region11: #{kl_divergence_per_pixel_loss.1} parent=5 // pred_region
      %s116 = ssub.s32 %s8, 1
    $region12: #{kl_divergence_per_pixel_loss.1} parent=5 // pred_fallthru
      _
    %p117 = scmp.lt.s32.totalorder %s8, 2
    // Predicated region
    $region13: #{kl_divergence_per_pixel_loss.1} parent=5 // pred_check
      %p118 = pneg %p117
    $region14: #{kl_divergence_per_pixel_loss.1} parent=5 // pred_check_branch
      %120 = sbr.rel (%p118) target = $region16
    $region15: #{kl_divergence_per_pixel_loss.1} parent=5 // pred_region
      // Predicated region
      $region17: #{kl_divergence_per_pixel_loss.1} parent=15 // pred_check
        %p121 = pneg %p42
      $region18: #{kl_divergence_per_pixel_loss.1} parent=15 // pred_check_branch
        %123 = sbr.rel (%p121) target = $region20
      $region19: #{kl_divergence_per_pixel_loss.1} parent=15 // pred_region
        %s124 = smul.u32 2, %s16
        %p125 = scmp.lt.s32.totalorder %s15, 1
        %s126 = scalar_select %p125, %s15, 1
        %p127 = scmp.lt.s32.totalorder %s124, 1
        %s128 = scalar_select %p127, %s124, 1
        %s129 = smul.addr %s126, 2
        %s130 = sadd.s32 %s128, %s129
        %s131 = smul.addr %s130, 4
        %s132 = scalar_lea.vmem %s0, %s131
        %s133 = smul.u32 2, %s16
      $region20: #{kl_divergence_per_pixel_loss.1} parent=15 // pred_fallthru
        _
      // Predicated region
      $region21: #{kl_divergence_per_pixel_loss.1} parent=15 // pred_check
        %p134 = pneg %p70
      $region22: #{kl_divergence_per_pixel_loss.1} parent=15 // pred_check_branch
        %136 = sbr.rel (%p134) target = $region24
      $region23: #{kl_divergence_per_pixel_loss.1} parent=15 // pred_region
        %s137 = smul.u32 2, %s16
        %p138 = scmp.lt.s32.totalorder %s15, 1
        %s139 = scalar_select %p138, %s15, 1
        %p140 = scmp.lt.s32.totalorder %s137, 1
        %s141 = scalar_select %p140, %s137, 1
        %s142 = smul.addr %s139, 2
        %s143 = sadd.s32 %s141, %s142
        %s144 = smul.addr %s143, 4
        %s145 = scalar_lea.vmem %s1, %s144
        %s146 = smul.u32 2, %s16
      $region24: #{kl_divergence_per_pixel_loss.1} parent=15 // pred_fallthru
        _
    $region16: #{kl_divergence_per_pixel_loss.1} parent=5 // pred_fallthru
      _
    %p147 = scmp.le.s32.totalorder 1, %s8
    %p148 = scmp.lt.s32.totalorder %s8, 3
    %p149 = pnand %p147, %p148
    %p150 = pneg %p149
    // Predicated region
    $region25: #{kl_divergence_per_pixel_loss.1} parent=5 // pred_check
      _
    $region26: #{kl_divergence_per_pixel_loss.1} parent=5 // pred_check_branch
      %152 = sbr.rel (%p149) target = $region28
    $region27: #{kl_divergence_per_pixel_loss.1} parent=5 // pred_region
      %s153 = ssub.s32 %s8, 1
      %s154 = smul.u32 2, %s18
      %p155 = scmp.lt.s32.totalorder %s17, 1
      %s156 = scalar_select %p155, %s17, 1
      %p157 = scmp.lt.s32.totalorder %s154, 1
      %s158 = scalar_select %p157, %s154, 1
      %s159 = smul.addr %s156, 2
      %s160 = sadd.s32 %s158, %s159
      %s161 = smul.addr %s160, 4
      %s162 = scalar_lea.vmem %s0, %s161
      %p163 = pneg %p48
      %p164 = pneg %p45
      %s165 = smul.u32 2, %s18
      %p166 = scmp.lt.s32.totalorder %s17, 1
      %s167 = scalar_select %p166, %s17, 1
      %p168 = scmp.lt.s32.totalorder %s165, 1
      %s169 = scalar_select %p168, %s165, 1
      %s170 = smul.addr %s167, 2
      %s171 = sadd.s32 %s169, %s170
      %s172 = smul.addr %s171, 4
      %s173 = scalar_lea.vmem %s1, %s172
      %p174 = pneg %p76
      %p175 = pneg %p73
      %p176 = pneg %p102
      %p177 = pneg %p99
      %p178 = scmp.lt.s32.totalorder %s17, 1
      %s179 = scalar_select %p178, %s17, 1
      %s180 = smul.addr %s179, 8
      %s181 = scalar_lea.vmem %s2, %s180
      %s182 = smul.u32 2, %s18
      %p183 = scmp.lt.s32.totalorder %s17, 1
      %s184 = scalar_select %p183, %s17, 1
      %p185 = scmp.lt.s32.totalorder %s182, 1
      %s186 = scalar_select %p185, %s182, 1
      %s187 = smul.addr %s184, 2
      %s188 = sadd.s32 %s186, %s187
      %s189 = smul.addr %s188, 4
      %s190 = scalar_lea.vmem %s0, %s189
      %s191 = smul.u32 2, %s18
      %s192 = smul.u32 2, %s18
      %p193 = scmp.lt.s32.totalorder %s17, 1
      %s194 = scalar_select %p193, %s17, 1
      %p195 = scmp.lt.s32.totalorder %s192, 1
      %s196 = scalar_select %p195, %s192, 1
      %s197 = smul.addr %s194, 2
      %s198 = sadd.s32 %s196, %s197
      %s199 = smul.addr %s198, 4
      %s200 = scalar_lea.vmem %s1, %s199
      %s201 = smul.u32 2, %s18
      %p202 = scmp.lt.s32.totalorder %s17, 1
      %s203 = scalar_select %p202, %s17, 1
      %s204 = smul.addr %s203, 8
      %s205 = scalar_lea.vmem %s2, %s204
      %p206 = scmp.eq.s32.totalorder %s18, 0
      // Predicated region
      $region29: #{kl_divergence_per_pixel_loss.1} parent=27 // pred_check
        %p207 = pneg %p206
      $region30: #{kl_divergence_per_pixel_loss.1} parent=27 // pred_check_branch
        %209 = sbr.rel (%p207) target = $region32
      $region31: #{kl_divergence_per_pixel_loss.1} parent=27 // pred_region
        %v210 = vlaneseq
        %vm211 = vcmp.ge.s32.totalorder %v210, 0
        %vm212 = vcmp.lt.s32.totalorder %v210, 256
        %vm213 = vmand %vm211, %vm212
        %214 = vst.msk [vmem:[#allocation2] sm:$0x3] %vm213, 0.0
      $region32: #{kl_divergence_per_pixel_loss.1} parent=27 // pred_fallthru
        _
      %v215 = vld [vmem:[%s190] sm:$0xff]
      %v216 = vld [vmem:[%s200] sm:$0xff]
      %v218 = vcombine.high %v215, %v215
      %vm220 = vcmask 1043456
      %v221 = vsel %vm220, %v215, -inf
      %v222 = vrot.slane %v221, 4
      %v223 = vmax.f32 %v221, %v222
      %v224 = vrot.slane %v223, 2
      %v225 = vmax.f32 %v223, %v224
      %v226 = vrot.slane %v225, 1
      %v227 = vmax.f32 %v225, %v226
      %v228 = vsel %vm220, %v218, -inf
      %v229 = vrot.slane %v228, 4
      %v230 = vmax.f32 %v228, %v229
      %v231 = vrot.slane %v230, 2
      %v232 = vmax.f32 %v230, %v231
      %v233 = vrot.slane %v232, 1
      %v234 = vmax.f32 %v232, %v233
      %v237 = vcombine.low %v227, %v234
      %v239 = vsub.f32 %v215, %v237
      %v240 = vmul.f32 %v239, 1.442695
      %v241 = vpow.pop %v240
      %v243 = vcombine.high %v241, %v241
      %v245 = vsel %vm220, %v241, 0.0
      %v246 = vrot.slane %v245, 4
      %v247 = vadd.f32 %v245, %v246
      %v248 = vrot.slane %v247, 2
      %v249 = vadd.f32 %v247, %v248
      %v250 = vrot.slane %v249, 1
      %v251 = vadd.f32 %v249, %v250
      %v252 = vsel %vm220, %v243, 0.0
      %v253 = vrot.slane %v252, 4
      %v254 = vadd.f32 %v252, %v253
      %v255 = vrot.slane %v254, 2
      %v256 = vadd.f32 %v254, %v255
      %v257 = vrot.slane %v256, 1
      %v258 = vadd.f32 %v256, %v257
      %v259 = vlog2.pop %v251
      %v260 = vmul.f32 %v259, 0.6931472
      %v261 = vlog2.pop %v258
      %v262 = vmul.f32 %v261, 0.6931472
      %v263 = vadd.f32 %v216, 1e-10
      %v264 = vlog2.pop %v263
      %v265 = vmul.f32 %v264, 0.6931472
      %v266 = vsub.f32 %v265, %v239
      %v267 = vmul.f32 %v216, %v266
      %v269 = vcombine.high %v267, %v267
      %v271 = vsel %vm220, %v267, 0.0
      %v272 = vrot.slane %v271, 4
      %v273 = vadd.f32 %v271, %v272
      %v274 = vrot.slane %v273, 2
      %v275 = vadd.f32 %v273, %v274
      %v276 = vrot.slane %v275, 1
      %v277 = vadd.f32 %v275, %v276
      %v278 = vsel %vm220, %v269, 0.0
      %v279 = vrot.slane %v278, 4
      %v280 = vadd.f32 %v278, %v279
      %v281 = vrot.slane %v280, 2
      %v282 = vadd.f32 %v280, %v281
      %v283 = vrot.slane %v282, 1
      %v284 = vadd.f32 %v282, %v283
      %v286 = vcombine.high %v216, %v216
      %v288 = vsel %vm220, %v216, 0.0
      %v289 = vrot.slane %v288, 4
      %v290 = vadd.f32 %v288, %v289
      %v291 = vrot.slane %v290, 2
      %v292 = vadd.f32 %v290, %v291
      %v293 = vrot.slane %v292, 1
      %v294 = vadd.f32 %v292, %v293
      %v295 = vsel %vm220, %v286, 0.0
      %v296 = vrot.slane %v295, 4
      %v297 = vadd.f32 %v295, %v296
      %v298 = vrot.slane %v297, 2
      %v299 = vadd.f32 %v297, %v298
      %v300 = vrot.slane %v299, 1
      %v301 = vadd.f32 %v299, %v300
      %v302 = vld [vmem:[#allocation2] sm:$0x3]
      %v303 = vmul.f32 %v260, %v294
      %v304 = vmul.f32 %v262, %v301
      %v305 = vadd.f32 %v277, %v303
      %v306 = vadd.f32 %v284, %v304
      %v309 = vcombine.low %v305, %v306
      %v311 = vunpack.c.l.s4 1966171168
      %v312 = vunpack.c.0.s8 %v311
      %v313 = vlaneseq
      %v314 = vshrl.u32 %v313, 7
      %v315 = vsub.s32 %v312, %v314
      %v316 = vrot.slane %v309, %v315
      %v318 = vunpack.c.l.s4 1966171168
      %v319 = vunpack.c.0.s8 %v318
      %v320 = vlaneseq
      %v321 = vshrl.u32 %v320, 7
      %v322 = vsub.s32 %v319, %v321
      %v323 = vrot.slane %v316, %v322
      %v325 = vadd.f32 %v302, %v323
      %v326 = vlaneseq
      %vm327 = vcmp.ge.s32.totalorder %v326, 0
      %vm328 = vcmp.lt.s32.totalorder %v326, 256
      %vm329 = vmand %vm327, %vm328
      %330 = vst.msk [vmem:[#allocation2] sm:$0x3] %vm329, %v325
      // Predicated region
      $region33: #{kl_divergence_per_pixel_loss.1} parent=27 // pred_check
        %p331 = pneg %p206
      $region34: #{kl_divergence_per_pixel_loss.1} parent=27 // pred_check_branch
        %333 = sbr.rel (%p331) target = $region36
      $region35: #{kl_divergence_per_pixel_loss.1} parent=27 // pred_region
        %v334 = vld [vmem:[#allocation2] sm:$0x3]
        %v336 = vlaneseq
        %v337 = vshrl.u32 %v336, 7
        %v338 = vsub.s32 0, %v337
        %v339 = vrot.slane %v334, %v338
        %v340 = vlaneseq
        %v341 = vshrl.u32 %v340, 7
        %v342 = vsub.s32 1, %v341
        %v343 = vrot.slane %v334, %v342
        %vm346 = vcmask 1040384
        %v347 = vsel %vm346, %v339, 0.0
        %v348 = vsel %vm346, %v343, 0.0
        %v349 = vadd.f32 %v347, %v348
        %350 = vadd.xlane.f32.xlu0 %v349
        %v351 = vpop.xlane.xlu0 %350
        %v352 = vrot.slane %v351, 4
        %v353 = vadd.f32 %v351, %v352
        %v354 = vrot.slane %v353, 2
        %v355 = vadd.f32 %v353, %v354
        %v356 = vrot.slane %v355, 1
        %v357 = vadd.f32 %v355, %v356
        %s358 = vtos %v357
        %v359 = vstv %s358
        %v360 = vadd.f32 %v359, 0.0
        %361 = vst [vmem:[%s205] sm:$0xff] %v360
      $region36: #{kl_divergence_per_pixel_loss.1} parent=27 // pred_fallthru
        _
      %p362 = scmp.lt.s32.totalorder %s17, 1
      %s363 = scalar_select %p362, %s17, 1
      %s364 = smul.addr %s363, 8
      %s365 = scalar_lea.vmem %s2, %s364
      // Predicated region
      $region37: #{kl_divergence_per_pixel_loss.1} parent=27 // pred_check
        %p366 = pneg %p99
      $region38: #{kl_divergence_per_pixel_loss.1} parent=27 // pred_check_branch
        %368 = sbr.rel (%p366) target = $region40
      $region39: #{kl_divergence_per_pixel_loss.1} parent=27 // pred_region
        _
      $region40: #{kl_divergence_per_pixel_loss.1} parent=27 // pred_fallthru
        _
    $region28: #{kl_divergence_per_pixel_loss.1} parent=5 // pred_fallthru
      _
    %p369 = scmp.le.s32.totalorder 2, %s8
    // Predicated region
    $region41: #{kl_divergence_per_pixel_loss.1} parent=5 // pred_check
      %p370 = pneg %p369
    $region42: #{kl_divergence_per_pixel_loss.1} parent=5 // pred_check_branch
      %372 = sbr.rel (%p370) target = $region44
    $region43: #{kl_divergence_per_pixel_loss.1} parent=5 // pred_region
      %s373 = ssub.s32 %s8, 2
      // Predicated region
      $region45: #{kl_divergence_per_pixel_loss.1} parent=43 // pred_check
        %p374 = pneg %p105
      $region46: #{kl_divergence_per_pixel_loss.1} parent=43 // pred_check_branch
        %376 = sbr.rel (%p374) target = $region48
      $region47: #{kl_divergence_per_pixel_loss.1} parent=43 // pred_region
        %p377 = scmp.lt.s32.totalorder %s19, 1
        %s378 = scalar_select %p377, %s19, 1
        %s379 = smul.addr %s378, 8
        %s380 = scalar_lea.vmem %s2, %s379
      $region48: #{kl_divergence_per_pixel_loss.1} parent=43 // pred_fallthru
        _
    $region44: #{kl_divergence_per_pixel_loss.1} parent=5 // pred_fallthru
      _
  $region6: #{kl_divergence_per_pixel_loss.1} parent=0 // loop_footer
    %s12 = sadd.s32 1, %s8
  $region7: #{kl_divergence_per_pixel_loss.1} parent=0 // loop_footer_branch
    %7 = sbr.rel target = $region3
  $region8: #{kl_divergence_per_pixel_loss.1} parent=0 // loop_exit
    _

</llo_original>
